<compile_context>
chip_gen: v5e
topology: v5e:2x2
jax: 0.10.0
libtpu: 0.0.40
codegen_flags: <defaults>
</compile_context>

<pallas_src>
import jax
import jax.numpy as jnp
import numpy as np
from jax.experimental import pallas as pl
from jax.experimental.pallas import tpu as pltpu


# ----------------------------------------------------------------------------
# Pallas kernel: fused [conv3x3 + BN + ReLU] x 2, one batch element per step
# ----------------------------------------------------------------------------
def up_conv_kernel(x2_ref, x1_ref, w1_ref, b1_ref, w2_ref, b2_ref, o_ref,
                   pad1_ref, pad2_ref):
    # x2_ref : (1, H, W*c_skip)    bf16  skip connection   (concat slab 0)
    # x1_ref : (1, H, W*c_up)      bf16  upsampled input   (concat slab 1)
    # w1_ref : (3, W*Cin,  W*Cmid) bf16  per-dy banded weights, BN1 folded
    # b1_ref : (1, W*Cmid)         f32   fused BN1 bias, tiled over w
    # w2_ref : (3, W*Cmid, W*Cout) bf16  per-dy banded weights, BN2 folded
    # b2_ref : (1, W*Cout)         f32
    # o_ref  : (1, H, W*Cout)      f32   lane-dense output block
    # pad1_ref: VMEM (H+2, W*Cin)  bf16  stage-1 rows + top/bottom zero halo
    # pad2_ref: VMEM (H+2, W*Cmid) bf16  stage-2 rows + top/bottom zero halo
    H = o_ref.shape[1]
    cols2 = x2_ref.shape[2]
    cols1 = x1_ref.shape[2]

    # Halo: only top/bottom rows need zeroing (horizontal zero-padding is
    # folded into the banded weights); these are full-width unmasked stores.
    # The interior rows are fully overwritten below.
    pad1_ref[0:1, :] = jnp.zeros((1, pad1_ref.shape[1]), pad1_ref.dtype)
    pad1_ref[H + 1:H + 2, :] = jnp.zeros((1, pad1_ref.shape[1]), pad1_ref.dtype)
    pad2_ref[0:1, :] = jnp.zeros((1, pad2_ref.shape[1]), pad2_ref.dtype)
    pad2_ref[H + 1:H + 2, :] = jnp.zeros((1, pad2_ref.shape[1]), pad2_ref.dtype)

    # Fused channel concat: torch.cat([x2, x1], dim=1) == two lane-dense slab
    # writes; no concatenate / reshape op, no HBM round trip of the concat.
    pad1_ref[1:H + 1, 0:cols2] = x2_ref[0]
    pad1_ref[1:H + 1, cols2:cols2 + cols1] = x1_ref[0]

    # ---- stage 1: conv3x3 + fused BN + ReLU (3 row-shifted matmuls) --------
    acc = jnp.dot(pad1_ref[0:H, :], w1_ref[0], preferred_element_type=jnp.float32)
    acc += jnp.dot(pad1_ref[1:H + 1, :], w1_ref[1], preferred_element_type=jnp.float32)
    acc += jnp.dot(pad1_ref[2:H + 2, :], w1_ref[2], preferred_element_type=jnp.float32)
    y1 = jnp.maximum(acc + b1_ref[...], 0.0)            # (H, W*Cmid) f32 epilogue

    # Stage-2 input stays in VMEM: one lane-dense bf16 store, no relayout.
    pad2_ref[1:H + 1, :] = y1.astype(pad2_ref.dtype)

    # ---- stage 2 ------------------------------------------------------------
    acc = jnp.dot(pad2_ref[0:H, :], w2_ref[0], preferred_element_type=jnp.float32)
    acc += jnp.dot(pad2_ref[1:H + 1, :], w2_ref[1], preferred_element_type=jnp.float32)
    acc += jnp.dot(pad2_ref[2:H + 2, :], w2_ref[2], preferred_element_type=jnp.float32)
    o_ref[0] = jnp.maximum(acc + b2_ref[...], 0.0)       # lane-dense f32 store


def fused_up_conv(x2_nhwc, x1_nhwc, M1, b1_row, M2, b2_row):
    """x2 (N,H,W,c_skip) + x1 (N,H,W,c_up)  ->  (N,H,W,Cout) f32."""
    N, H, W, c_skip = x2_nhwc.shape
    c_up = x1_nhwc.shape[3]
    mid_cols = M1.shape[2]            # W * Cmid
    out_cols = M2.shape[2]            # W * Cout
    c_out = out_cols // W

    # Contiguous NHWC -> (N, H, W*C): free reshape, lane-dense wide blocks.
    x2_in = x2_nhwc.reshape(N, H, W * c_skip).astype(jnp.bfloat16)
    x1_in = x1_nhwc.reshape(N, H, W * c_up).astype(jnp.bfloat16)

    out = pl.pallas_call(
        up_conv_kernel,
        out_shape=jax.ShapeDtypeStruct((N, H, out_cols), jnp.float32),
        grid_spec=pltpu.PrefetchScalarGridSpec(
            num_scalar_prefetch=0,
            grid=(N,),   # shards across TCs on v7x; cheap serial loop on v5e/v6e
            in_specs=[
                pl.BlockSpec((1, H, W * c_skip), lambda n: (n, 0, 0)),
                pl.BlockSpec((1, H, W * c_up), lambda n: (n, 0, 0)),
                pl.BlockSpec((3, W * (c_skip + c_up), mid_cols),
                             lambda n: (0, 0, 0)),
                pl.BlockSpec((1, mid_cols), lambda n: (0, 0)),
                pl.BlockSpec((3, mid_cols, out_cols), lambda n: (0, 0, 0)),
                pl.BlockSpec((1, out_cols), lambda n: (0, 0)),
            ],
            out_specs=pl.BlockSpec((1, H, out_cols), lambda n: (n, 0, 0)),
            scratch_shapes=[
                pltpu.VMEM((H + 2, W * (c_skip + c_up)), jnp.bfloat16),
                pltpu.VMEM((H + 2, mid_cols), jnp.bfloat16),
            ],
        ),
        compiler_params=pltpu.CompilerParams(
            dimension_semantics=("parallel",)),
    )(x2_in, x1_in,
      M1.astype(jnp.bfloat16), b1_row,
      M2.astype(jnp.bfloat16), b2_row)
    return out.reshape(N, H, W, c_out)


# ----------------------------------------------------------------------------
# Host-side weight preparation: BN folding + banded (horizontal-tap) matrices
# ----------------------------------------------------------------------------
def fuse_conv_bn(w_oihw, gamma, beta, running_mean, running_var, eps=1e-5):
    """Fold BN scale into the conv weight; return HWIO weight + f32 bias."""
    scale = gamma / jnp.sqrt(running_var + eps)          # (Cout,)
    w = w_oihw * scale[:, None, None, None]
    bias = beta - running_mean * scale
    w_hwio = jnp.transpose(w, (2, 3, 1, 0))              # OIHW -> (3,3,Cin,Cout)
    return w_hwio, bias


def build_banded_weight(w_hwio, width):
    """(3,3,C,Cout) -> (3, width*C, width*Cout); horizontal taps + zero padding
    are folded into a banded matrix so the kernel only row-shifts vertically."""
    w = np.asarray(jax.device_get(w_hwio))
    KH, KW, C, Cout = w.shape
    M = np.zeros((KH, width * C, width * Cout), np.float32)
    for wo in range(width):
        for dx in range(KW):
            wi = wo + dx - 1                     # input pixel column (0-based)
            if 0 <= wi < width:                  # out-of-range == zero padding
                M[:, wi * C:(wi + 1) * C, wo * Cout:(wo + 1) * Cout] = w[:, dx]
    return jnp.asarray(M)


def init_params(key, c_skip, c_up, out_channels, width, eps=1e-5):
    in_channels = c_skip + c_up
    k1, k2 = jax.random.split(key)
    # PyTorch Conv2d weight layout: (Cout, Cin, 3, 3).
    w1 = jax.random.normal(k1, (out_channels, in_channels, 3, 3), jnp.float32) * 0.1
    w2 = jax.random.normal(k2, (out_channels, out_channels, 3, 3), jnp.float32) * 0.1
    # BatchNorm2d PyTorch-default parameters, inference mode.
    ones = jnp.ones((out_channels,), jnp.float32)
    zeros = jnp.zeros((out_channels,), jnp.float32)
    w1_hwio, b1 = fuse_conv_bn(w1, ones, zeros, zeros, ones, eps)
    w2_hwio, b2 = fuse_conv_bn(w2, ones, zeros, zeros, ones, eps)
    # Split stage-1 weights by concat slab ([x2 | x1] channel order).
    M1 = jnp.concatenate(
        [build_banded_weight(w1_hwio[:, :, :c_skip, :], width),
         build_banded_weight(w1_hwio[:, :, c_skip:, :], width)], axis=1)
    M2 = build_banded_weight(w2_hwio, width)
    return {"M1": M1, "b1": jnp.tile(b1, width)[None, :],
            "M2": M2, "b2": jnp.tile(b2, width)[None, :],
            # natural-form folded weights kept for the in-script reference check
            "w1_hwio": w1_hwio, "bias1": b1, "w2_hwio": w2_hwio, "bias2": b2}


# ----------------------------------------------------------------------------
# Glue: bilinear resize with align_corners=True (PyTorch semantics), NHWC
# ----------------------------------------------------------------------------
def resize_bilinear_ac_nhwc(x, out_h, out_w):
    N, H, W, C = x.shape

    def coords(out_sz, in_sz):
        if out_sz == 1:
            return jnp.zeros((out_sz,), jnp.float32)
        return jnp.arange(out_sz, dtype=jnp.float32) * (in_sz - 1) / (out_sz - 1)

    ys, xs = coords(out_h, H), coords(out_w, W)
    y0 = jnp.clip(jnp.floor(ys).astype(jnp.int32), 0, H - 1)
    y1 = jnp.minimum(y0 + 1, H - 1)
    x0 = jnp.clip(jnp.floor(xs).astype(jnp.int32), 0, W - 1)
    x1 = jnp.minimum(x0 + 1, W - 1)
    wy = (ys - y0.astype(jnp.float32))[None, :, None, None]
    wx = (xs - x0.astype(jnp.float32))[None, None, :, None]
    top, bot = x[:, y0, :, :], x[:, y1, :, :]
    a, b = top[:, :, x0, :], top[:, :, x1, :]
    c, d = bot[:, :, x0, :], bot[:, :, x1, :]
    return (a * (1 - wy) * (1 - wx) + b * (1 - wy) * wx
            + c * wy * (1 - wx) + d * wy * wx)


# ----------------------------------------------------------------------------
# Full `Up.forward`
# ----------------------------------------------------------------------------
def up_forward(params, x1, x2):
    """x1 (low-res) and x2 (skip) in NCHW; returns NCHW."""
    _, _, h, w = x2.shape
    x1 = jnp.transpose(x1, (0, 2, 3, 1))
    x2 = jnp.transpose(x2, (0, 2, 3, 1))
    # nn.Upsample(scale_factor=2, bilinear, align_corners=True)
    x1 = resize_bilinear_ac_nhwc(x1, x1.shape[1] * 2, x1.shape[2] * 2)
    # F.interpolate(..., (h, w), bilinear, align_corners=True) if needed
    if x1.shape[1] != h or x1.shape[2] != w:
        x1 = resize_bilinear_ac_nhwc(x1, h, w)
    y = fused_up_conv(x2, x1, params["M1"], params["b1"],
                      params["M2"], params["b2"])        # (N, h, w, Cout)
    return jnp.transpose(y, (0, 3, 1, 2))


# ----------------------------------------------------------------------------
# XLA reference for the fused double conv (bf16-rounded inputs/weights)
# ----------------------------------------------------------------------------
def reference_double_conv(x_nhwc, w1_hwio, b1, w2_hwio, b2):
    def conv(x, w):
        return jax.lax.conv_general_dilated(
            x, w.astype(jnp.bfloat16).astype(jnp.float32),
            window_strides=(1, 1), padding="SAME",
            dimension_numbers=("NHWC", "HWIO", "NHWC"))
    x = x_nhwc.astype(jnp.bfloat16).astype(jnp.float32)
    y = jnp.maximum(conv(x, w1_hwio) + b1, 0.0)
    y = y.astype(jnp.bfloat16).astype(jnp.float32)
    return jnp.maximum(conv(y, w2_hwio) + b2, 0.0)


if __name__ == "__main__":
    key = jax.random.PRNGKey(0)
    k1, k2, kp, kc = jax.random.split(key, 4)

    N = 2
    c_skip, c_up = 8, 8                 # x2 (skip) and x1 (upsampled) channels
    H = W = 16
    out_channels = 8                    # W*Cout = 128 -> lane-dense stores
    x2 = jax.random.normal(k2, (N, c_skip, H, W), jnp.float32)   # target spatial
    x1 = jax.random.normal(k1, (N, c_up, 9, 9), jnp.float32)     # 9 ->18 -> 16

    params = init_params(kp, c_skip, c_up, out_channels, W)

    # --- kernel correctness check against an XLA conv reference -------------
    xa = jax.random.normal(kc, (N, H, W, c_skip), jnp.float32)
    xb = jax.random.normal(jax.random.fold_in(kc, 1), (N, H, W, c_up), jnp.float32)
    got = fused_up_conv(xa, xb, params["M1"], params["b1"],
                        params["M2"], params["b2"])
    ref = reference_double_conv(jnp.concatenate([xa, xb], axis=-1),
                                params["w1_hwio"], params["bias1"],
                                params["w2_hwio"], params["bias2"])
    err = float(jnp.max(jnp.abs(got - ref)))
    assert err < 2e-2, f"kernel mismatch vs reference: max abs err {err}"

    # --- full `Up` forward ---------------------------------------------------
    fwd = jax.jit(up_forward)
    out = fwd(params, x1, x2)
    jax.block_until_ready(out)
    assert out.shape == (N, out_channels, H, W), out.shape
    print("KERNEL_OK")
</pallas_src>

<mosaic_0001>
module attributes {stable_mosaic.version = 11 : i64} {
  func.func @up_conv_kernel(%arg0: i32, %arg1: memref<1x16x128xbf16, #tpu.memory_space<vmem>>, %arg2: memref<1x16x128xbf16, #tpu.memory_space<vmem>>, %arg3: memref<3x256x128xbf16, #tpu.memory_space<vmem>>, %arg4: memref<1x128xf32, #tpu.memory_space<vmem>>, %arg5: memref<3x128x128xbf16, #tpu.memory_space<vmem>>, %arg6: memref<1x128xf32, #tpu.memory_space<vmem>>, %arg7: memref<1x16x128xf32, #tpu.memory_space<vmem>>, %arg8: memref<18x256xbf16, #tpu.memory_space<vmem>>, %arg9: memref<18x128xbf16, #tpu.memory_space<vmem>>) attributes {dimension_semantics = [#tpu.dimension_semantics<parallel>], iteration_bounds = array<i64: 2>, scalar_prefetch = 0 : i64, scratch_operands = 2 : i64, tpu.core_type = #tpu.core_type<tc>, window_params = [{transform_indices = @transform_0, window_bounds = array<i64: 1, 16, 128>}, {transform_indices = @transform_1, window_bounds = array<i64: 1, 16, 128>}, {pipeline_mode = #tpu.pipeline_mode<synchronous>, transform_indices = @transform_2, window_bounds = array<i64: 3, 256, 128>}, {pipeline_mode = #tpu.pipeline_mode<synchronous>, transform_indices = @transform_3, window_bounds = array<i64: 1, 128>}, {pipeline_mode = #tpu.pipeline_mode<synchronous>, transform_indices = @transform_4, window_bounds = array<i64: 3, 128, 128>}, {pipeline_mode = #tpu.pipeline_mode<synchronous>, transform_indices = @transform_5, window_bounds = array<i64: 1, 128>}, {transform_indices = @transform_6, window_bounds = array<i64: 1, 16, 128>}]} {
    %cst = arith.constant 0.000000e+00 : bf16
    %0 = vector.broadcast %cst : bf16 to vector<1x256xbf16>
    %c0 = arith.constant 0 : index
    %c0_0 = arith.constant 0 : index
    %1 = vector.load %arg8[%c0, %c0_0] : memref<18x256xbf16, #tpu.memory_space<vmem>>, vector<1x256xbf16>
    tpu.vector_store %arg8[%c0, %c0_0], %0 {strides = array<i32>} : memref<18x256xbf16, #tpu.memory_space<vmem>>, vector<1x256xbf16>,
    %cst_1 = arith.constant 0.000000e+00 : bf16
    %2 = vector.broadcast %cst_1 : bf16 to vector<1x256xbf16>
    %c17 = arith.constant 17 : index
    %c0_2 = arith.constant 0 : index
    %3 = vector.load %arg8[%c17, %c0_2] : memref<18x256xbf16, #tpu.memory_space<vmem>>, vector<1x256xbf16>
    tpu.vector_store %arg8[%c17, %c0_2], %2 {strides = array<i32>} : memref<18x256xbf16, #tpu.memory_space<vmem>>, vector<1x256xbf16>,
    %cst_3 = arith.constant 0.000000e+00 : bf16
    %4 = vector.broadcast %cst_3 : bf16 to vector<1x128xbf16>
    %c0_4 = arith.constant 0 : index
    %c0_5 = arith.constant 0 : index
    %5 = vector.load %arg9[%c0_4, %c0_5] : memref<18x128xbf16, #tpu.memory_space<vmem>>, vector<1x128xbf16>
    tpu.vector_store %arg9[%c0_4, %c0_5], %4 {strides = array<i32>} : memref<18x128xbf16, #tpu.memory_space<vmem>>, vector<1x128xbf16>,
    %cst_6 = arith.constant 0.000000e+00 : bf16
    %6 = vector.broadcast %cst_6 : bf16 to vector<1x128xbf16>
    %c17_7 = arith.constant 17 : index
    %c0_8 = arith.constant 0 : index
    %7 = vector.load %arg9[%c17_7, %c0_8] : memref<18x128xbf16, #tpu.memory_space<vmem>>, vector<1x128xbf16>
    tpu.vector_store %arg9[%c17_7, %c0_8], %6 {strides = array<i32>} : memref<18x128xbf16, #tpu.memory_space<vmem>>, vector<1x128xbf16>,
    %c0_9 = arith.constant 0 : index
    %c0_10 = arith.constant 0 : index
    %c0_11 = arith.constant 0 : index
    %8 = vector.load %arg1[%c0_9, %c0_10, %c0_11] : memref<1x16x128xbf16, #tpu.memory_space<vmem>>, vector<1x16x128xbf16>
    %9 = vector.shape_cast %8 : vector<1x16x128xbf16> to vector<16x128xbf16>
    %c1 = arith.constant 1 : index
    %c0_12 = arith.constant 0 : index
    %10 = vector.load %arg8[%c1, %c0_12] : memref<18x256xbf16, #tpu.memory_space<vmem>>, vector<16x128xbf16>
    tpu.vector_store %arg8[%c1, %c0_12], %9 {strides = array<i32>} : memref<18x256xbf16, #tpu.memory_space<vmem>>, vector<16x128xbf16>,
    %c0_13 = arith.constant 0 : index
    %c0_14 = arith.constant 0 : index
    %c0_15 = arith.constant 0 : index
    %11 = vector.load %arg2[%c0_13, %c0_14, %c0_15] : memref<1x16x128xbf16, #tpu.memory_space<vmem>>, vector<1x16x128xbf16>
    %12 = vector.shape_cast %11 : vector<1x16x128xbf16> to vector<16x128xbf16>
    %c1_16 = arith.constant 1 : index
    %c128 = arith.constant 128 : index
    %13 = vector.load %arg8[%c1_16, %c128] : memref<18x256xbf16, #tpu.memory_space<vmem>>, vector<16x128xbf16>
    tpu.vector_store %arg8[%c1_16, %c128], %12 {strides = array<i32>} : memref<18x256xbf16, #tpu.memory_space<vmem>>, vector<16x128xbf16>,
    %c0_17 = arith.constant 0 : index
    %c0_18 = arith.constant 0 : index
    %14 = vector.load %arg8[%c0_17, %c0_18] : memref<18x256xbf16, #tpu.memory_space<vmem>>, vector<16x256xbf16>
    %c0_19 = arith.constant 0 : index
    %c0_20 = arith.constant 0 : index
    %c0_21 = arith.constant 0 : index
    %15 = vector.load %arg3[%c0_19, %c0_20, %c0_21] : memref<3x256x128xbf16, #tpu.memory_space<vmem>>, vector<1x256x128xbf16>
    %16 = vector.shape_cast %15 : vector<1x256x128xbf16> to vector<256x128xbf16>
    %cst_22 = arith.constant dense<0.000000e+00> : vector<16x128xf32>
    %17 = tpu.matmul %14, %16, %cst_22 {dimension_numbers = #tpu.dot_dimension_numbers<[1], [0], [0], [1], [0, 0, 1, 1], [], []>} : vector<16x256xbf16>, vector<256x128xbf16>, vector<16x128xf32> -> vector<16x128xf32>
    %c1_23 = arith.constant 1 : index
    %c0_24 = arith.constant 0 : index
    %18 = vector.load %arg8[%c1_23, %c0_24] : memref<18x256xbf16, #tpu.memory_space<vmem>>, vector<16x256xbf16>
    %c1_25 = arith.constant 1 : index
    %c0_26 = arith.constant 0 : index
    %c0_27 = arith.constant 0 : index
    %19 = vector.load %arg3[%c1_25, %c0_26, %c0_27] : memref<3x256x128xbf16, #tpu.memory_space<vmem>>, vector<1x256x128xbf16>
    %20 = vector.shape_cast %19 : vector<1x256x128xbf16> to vector<256x128xbf16>
    %cst_28 = arith.constant dense<0.000000e+00> : vector<16x128xf32>
    %21 = tpu.matmul %18, %20, %cst_28 {dimension_numbers = #tpu.dot_dimension_numbers<[1], [0], [0], [1], [0, 0, 1, 1], [], []>} : vector<16x256xbf16>, vector<256x128xbf16>, vector<16x128xf32> -> vector<16x128xf32>
    %22 = arith.addf %17, %21 : vector<16x128xf32>
    %c2 = arith.constant 2 : index
    %c0_29 = arith.constant 0 : index
    %23 = vector.load %arg8[%c2, %c0_29] : memref<18x256xbf16, #tpu.memory_space<vmem>>, vector<16x256xbf16>
    %c2_30 = arith.constant 2 : index
    %c0_31 = arith.constant 0 : index
    %c0_32 = arith.constant 0 : index
    %24 = vector.load %arg3[%c2_30, %c0_31, %c0_32] : memref<3x256x128xbf16, #tpu.memory_space<vmem>>, vector<1x256x128xbf16>
    %25 = vector.shape_cast %24 : vector<1x256x128xbf16> to vector<256x128xbf16>
    %cst_33 = arith.constant dense<0.000000e+00> : vector<16x128xf32>
    %26 = tpu.matmul %23, %25, %cst_33 {dimension_numbers = #tpu.dot_dimension_numbers<[1], [0], [0], [1], [0, 0, 1, 1], [], []>} : vector<16x256xbf16>, vector<256x128xbf16>, vector<16x128xf32> -> vector<16x128xf32>
    %27 = arith.addf %22, %26 : vector<16x128xf32>
    %c0_34 = arith.constant 0 : index
    %c0_35 = arith.constant 0 : index
    %28 = vector.load %arg4[%c0_34, %c0_35] : memref<1x128xf32, #tpu.memory_space<vmem>>, vector<1x128xf32>
    %29 = vector.broadcast %28 : vector<1x128xf32> to vector<16x128xf32>
    %30 = arith.addf %27, %29 : vector<16x128xf32>
    %cst_36 = arith.constant 0.000000e+00 : f32
    %31 = vector.broadcast %cst_36 : f32 to vector<16x128xf32>
    %32 = arith.maximumf %30, %31 : vector<16x128xf32>
    %33 = arith.truncf %32 : vector<16x128xf32> to vector<16x128xbf16>
    %c1_37 = arith.constant 1 : index
    %c0_38 = arith.constant 0 : index
    %34 = vector.load %arg9[%c1_37, %c0_38] : memref<18x128xbf16, #tpu.memory_space<vmem>>, vector<16x128xbf16>
    tpu.vector_store %arg9[%c1_37, %c0_38], %33 {strides = array<i32>} : memref<18x128xbf16, #tpu.memory_space<vmem>>, vector<16x128xbf16>,
    %c0_39 = arith.constant 0 : index
    %c0_40 = arith.constant 0 : index
    %35 = vector.load %arg9[%c0_39, %c0_40] : memref<18x128xbf16, #tpu.memory_space<vmem>>, vector<16x128xbf16>
    %c0_41 = arith.constant 0 : index
    %c0_42 = arith.constant 0 : index
    %c0_43 = arith.constant 0 : index
    %36 = vector.load %arg5[%c0_41, %c0_42, %c0_43] : memref<3x128x128xbf16, #tpu.memory_space<vmem>>, vector<1x128x128xbf16>
    %37 = vector.shape_cast %36 : vector<1x128x128xbf16> to vector<128x128xbf16>
    %cst_44 = arith.constant dense<0.000000e+00> : vector<16x128xf32>
    %38 = tpu.matmul %35, %37, %cst_44 {dimension_numbers = #tpu.dot_dimension_numbers<[1], [0], [0], [1], [0, 0, 1, 1], [], []>} : vector<16x128xbf16>, vector<128x128xbf16>, vector<16x128xf32> -> vector<16x128xf32>
    %c1_45 = arith.constant 1 : index
    %c0_46 = arith.constant 0 : index
    %39 = vector.load %arg9[%c1_45, %c0_46] : memref<18x128xbf16, #tpu.memory_space<vmem>>, vector<16x128xbf16>
    %c1_47 = arith.constant 1 : index
    %c0_48 = arith.constant 0 : index
    %c0_49 = arith.constant 0 : index
    %40 = vector.load %arg5[%c1_47, %c0_48, %c0_49] : memref<3x128x128xbf16, #tpu.memory_space<vmem>>, vector<1x128x128xbf16>
    %41 = vector.shape_cast %40 : vector<1x128x128xbf16> to vector<128x128xbf16>
    %cst_50 = arith.constant dense<0.000000e+00> : vector<16x128xf32>
    %42 = tpu.matmul %39, %41, %cst_50 {dimension_numbers = #tpu.dot_dimension_numbers<[1], [0], [0], [1], [0, 0, 1, 1], [], []>} : vector<16x128xbf16>, vector<128x128xbf16>, vector<16x128xf32> -> vector<16x128xf32>
    %43 = arith.addf %38, %42 : vector<16x128xf32>
    %c2_51 = arith.constant 2 : index
    %c0_52 = arith.constant 0 : index
    %44 = vector.load %arg9[%c2_51, %c0_52] : memref<18x128xbf16, #tpu.memory_space<vmem>>, vector<16x128xbf16>
    %c2_53 = arith.constant 2 : index
    %c0_54 = arith.constant 0 : index
    %c0_55 = arith.constant 0 : index
    %45 = vector.load %arg5[%c2_53, %c0_54, %c0_55] : memref<3x128x128xbf16, #tpu.memory_space<vmem>>, vector<1x128x128xbf16>
    %46 = vector.shape_cast %45 : vector<1x128x128xbf16> to vector<128x128xbf16>
    %cst_56 = arith.constant dense<0.000000e+00> : vector<16x128xf32>
    %47 = tpu.matmul %44, %46, %cst_56 {dimension_numbers = #tpu.dot_dimension_numbers<[1], [0], [0], [1], [0, 0, 1, 1], [], []>} : vector<16x128xbf16>, vector<128x128xbf16>, vector<16x128xf32> -> vector<16x128xf32>
    %48 = arith.addf %43, %47 : vector<16x128xf32>
    %c0_57 = arith.constant 0 : index
    %c0_58 = arith.constant 0 : index
    %49 = vector.load %arg6[%c0_57, %c0_58] : memref<1x128xf32, #tpu.memory_space<vmem>>, vector<1x128xf32>
    %50 = vector.broadcast %49 : vector<1x128xf32> to vector<16x128xf32>
    %51 = arith.addf %48, %50 : vector<16x128xf32>
    %cst_59 = arith.constant 0.000000e+00 : f32
    %52 = vector.broadcast %cst_59 : f32 to vector<16x128xf32>
    %53 = arith.maximumf %51, %52 : vector<16x128xf32>
    %c0_60 = arith.constant 0 : index
    %c0_61 = arith.constant 0 : index
    %c0_62 = arith.constant 0 : index
    %54 = vector.load %arg7[%c0_60, %c0_61, %c0_62] : memref<1x16x128xf32, #tpu.memory_space<vmem>>, vector<1x16x128xf32>
    %55 = vector.shape_cast %54 : vector<1x16x128xf32> to vector<16x128xf32>
    %56 = vector.shape_cast %53 : vector<16x128xf32> to vector<1x16x128xf32>
    tpu.vector_store %arg7[%c0_60, %c0_61, %c0_62], %56 {strides = array<i32>} : memref<1x16x128xf32, #tpu.memory_space<vmem>>, vector<1x16x128xf32>,
    return
  }
  func.func @transform_0(%arg0: i32) -> (i32, i32, i32) {
    %c0_i32 = arith.constant 0 : i32
    %c0_i32_0 = arith.constant 0 : i32
    %c0_i32_1 = arith.constant 0 : i32
    return %arg0, %c0_i32, %c0_i32_0 : i32, i32, i32
  }
  func.func @transform_1(%arg0: i32) -> (i32, i32, i32) {
    %c0_i32 = arith.constant 0 : i32
    %c0_i32_0 = arith.constant 0 : i32
    %c0_i32_1 = arith.constant 0 : i32
    return %arg0, %c0_i32, %c0_i32_0 : i32, i32, i32
  }
  func.func @transform_2(%arg0: i32) -> (i32, i32, i32) {
    %c0_i32 = arith.constant 0 : i32
    %c0_i32_0 = arith.constant 0 : i32
    %c0_i32_1 = arith.constant 0 : i32
    %c0_i32_2 = arith.constant 0 : i32
    return %c0_i32, %c0_i32_0, %c0_i32_1 : i32, i32, i32
  }
  func.func @transform_3(%arg0: i32) -> (i32, i32) {
    %c0_i32 = arith.constant 0 : i32
    %c0_i32_0 = arith.constant 0 : i32
    %c0_i32_1 = arith.constant 0 : i32
    return %c0_i32, %c0_i32_0 : i32, i32
  }
  func.func @transform_4(%arg0: i32) -> (i32, i32, i32) {
    %c0_i32 = arith.constant 0 : i32
    %c0_i32_0 = arith.constant 0 : i32
    %c0_i32_1 = arith.constant 0 : i32
    %c0_i32_2 = arith.constant 0 : i32
    return %c0_i32, %c0_i32_0, %c0_i32_1 : i32, i32, i32
  }
  func.func @transform_5(%arg0: i32) -> (i32, i32) {
    %c0_i32 = arith.constant 0 : i32
    %c0_i32_0 = arith.constant 0 : i32
    %c0_i32_1 = arith.constant 0 : i32
    return %c0_i32, %c0_i32_0 : i32, i32
  }
  func.func @transform_6(%arg0: i32) -> (i32, i32, i32) {
    %c0_i32 = arith.constant 0 : i32
    %c0_i32_0 = arith.constant 0 : i32
    %c0_i32_1 = arith.constant 0 : i32
    return %arg0, %c0_i32, %c0_i32_0 : i32, i32, i32
  }
}

</mosaic_0001>

<llo_original>
// kernel: tpu_custom_call.1
$region0: #{tpu_custom_call.1}
  #allocation0 [shape = 'u32[]', space=smem, size = 0x4, offset = 0x4, fixed_abs, tag = 'smem constant byte address 0x4 - core index']
  #allocation1 [shape = 'u32[72,128]{1,0:T(1,128)}', space=vmem, size = 0x9000, scoped, tag = 'internal scratch']
  #allocation2 [shape = 'bf16[18,256]{1,0:T(8,128)(2,1)}', space=vmem, size = 0x3000, scoped, tag = 'scratch operand']
  #allocation3 [shape = 'bf16[18,128]{1,0:T(8,128)(2,1)}', space=vmem, size = 0x1800, scoped, tag = 'scratch operand']
  %s0 = inlined_call_operand.hbm [shape: bf16[2,16,128], index: 0, kind: input, shape index: {}]
  %s1 = inlined_call_operand.hbm [shape: bf16[2,16,128], index: 1, kind: input, shape index: {}]
  %s2 = inlined_call_operand.hbm [shape: bf16[3,256,128], index: 2, kind: input, shape index: {}]
  %s3 = inlined_call_operand.vmem [shape: f32[1,128], index: 3, kind: input, shape index: {}]
  %s4 = inlined_call_operand.hbm [shape: bf16[3,128,128], index: 4, kind: input, shape index: {}]
  %s5 = inlined_call_operand.vmem [shape: f32[1,128], index: 5, kind: input, shape index: {}]
  %s6 = inlined_call_operand.hbm [shape: f32[2,16,128], index: 6, kind: output, shape index: {}]
  %s7 = sld [smem:[#allocation0]]
  $region73: #{tpu_custom_call.1} parent=0
    _
  %s9 = ssub.s32 1, %s7
  %s10 = scalar_select 0, %s9, %s7
  $region1: #{tpu_custom_call.1} parent=0
    #allocation4 [shape = 'u8[8192]{0}', space=vmem, size = 0x2000, scoped, tag = 'input window, operand 0']
    #allocation5 [shape = 's32[2]{0}', space=sflag, size = 0x8, scoped, tag = 'scoped memory for tpu_custom_call.1']
    #allocation6 [shape = 's32[2]{0}', space=sflag, size = 0x8, scoped, tag = 'scoped memory for tpu_custom_call.1']
    #allocation7 [shape = 'u8[8192]{0}', space=vmem, size = 0x2000, scoped, tag = 'input window, operand 1']
    #allocation8 [shape = 's32[2]{0}', space=sflag, size = 0x8, scoped, tag = 'scoped memory for tpu_custom_call.1']
    #allocation9 [shape = 'u8[196608]{0}', space=vmem, size = 0x30000, scoped, tag = 'input window, operand 2, single buffered']
    #allocation10 [shape = 'u8[98304]{0}', space=vmem, size = 0x18000, scoped, tag = 'input window, operand 4, single buffered']
    #allocation11 [shape = 's32[1]{0}', space=sflag, size = 0x4, scoped, tag = 'scoped memory for tpu_custom_call.1']
    #allocation12 [shape = 'u8[16384]{0}', space=vmem, size = 0x4000, scoped, tag = 'output window, operand 0']
    %11 = vsyncpa [#allocation5], 0
    %s12 = scalar_lea.sflag [#allocation5], 1
    %13 = vsyncpa %s12, 0
    %14 = vsyncpa [#allocation8], 0
    %s15 = scalar_lea.sflag [#allocation8], 1
    %16 = vsyncpa %s15, 0
    %17 = vsyncpa [#allocation11], 0
    %18 = vsyncpa [#allocation6], 0
    %s19 = scalar_lea.sflag [#allocation6], 1
    %20 = vsyncpa %s19, 0
    loop: start=0, step=1, limit=4
    $region2: #{tpu_custom_call.1} parent=1 // loop_pre_header
      _
    $region3: #{tpu_custom_call.1} parent=1 // loop_header
      %s22 = sphi 0, %s26
      %p23 = scmp.ge.s32.totalorder %s22, 4
      %s32 = sphi 0, %s34
      %s35 = sphi 0, %s32
      %s36 = sphi 0, %s35
      %s52 = sphi 0, %s36
      %s58 = sphi 0, %s60
      %s61 = sphi 0, %s58
      %s62 = sphi 0, %s61
      %s78 = sphi 0, %s62
      %s82 = sphi 0, %s82
      %s84 = sphi 0, %s82
      %s85 = sphi 0, %s84
      %s99 = sphi 0, %s85
      %s103 = sphi 0, %s103
      %s105 = sphi 0, %s103
      %s106 = sphi 0, %s105
      %s120 = sphi 0, %s106
      %s124 = sphi 0, %s124
      %s126 = sphi 0, %s124
      %s127 = sphi 0, %s126
      %s141 = sphi 0, %s127
      %s145 = sphi 0, %s145
      %s147 = sphi 0, %s145
      %s148 = sphi 0, %s147
      %s162 = sphi 0, %s148
      %s168 = sphi 0, %s170
      %s171 = sphi 0, %s168
      %s172 = sphi 0, %s171
      %s188 = sphi 0, %s172
    $region4: #{tpu_custom_call.1} parent=1 // loop_header_branch
      %25 = sbr.rel (%p23) target = $region8
    $region5: #{tpu_custom_call.1} parent=1 // loop_body
      %s27 = ssub.s32 %s22, 1
      %s28 = ssub.s32 %s22, 2
      %s29 = sadd.s32 %s22, 1
      %s30 = ssub.s32 %s22, %s29
      %p31 = scmp.eq.s32.totalorder %s30, 0
      %s33 = sadd.s32 %s32, 1
      %s34 = scalar_select %p31, %s32, %s33
      %p37 = pneg %p31
      %p38 = scmp.eq.s32.totalorder %s22, 1
      %p39 = por %p37, %p38
      %p40 = scmp.ne.s32.totalorder %s32, %s35
      %p41 = scmp.eq.s32.totalorder %s22, 0
      %p42 = por %p40, %p41
      %p43 = scmp.ne.s32.totalorder %s32, %s35
      %p44 = scmp.eq.s32.totalorder %s27, 1
      %p45 = por %p43, %p44
      %p46 = scmp.ne.s32.totalorder %s35, %s36
      %p47 = scmp.eq.s32.totalorder %s27, 0
      %p48 = por %p46, %p47
      %p49 = scmp.ne.s32.totalorder %s35, %s36
      %p50 = scmp.eq.s32.totalorder %s28, 1
      %p51 = por %p49, %p50
      %p53 = scmp.ne.s32.totalorder %s36, %s52
      %p54 = scmp.eq.s32.totalorder %s28, 0
      %p55 = por %p53, %p54
      %s56 = ssub.s32 %s22, %s29
      %p57 = scmp.eq.s32.totalorder %s56, 0
      %s59 = sadd.s32 %s58, 1
      %s60 = scalar_select %p57, %s58, %s59
      %p63 = pneg %p57
      %p64 = scmp.eq.s32.totalorder %s22, 1
      %p65 = por %p63, %p64
      %p66 = scmp.ne.s32.totalorder %s58, %s61
      %p67 = scmp.eq.s32.totalorder %s22, 0
      %p68 = por %p66, %p67
      %p69 = scmp.ne.s32.totalorder %s58, %s61
      %p70 = scmp.eq.s32.totalorder %s27, 1
      %p71 = por %p69, %p70
      %p72 = scmp.ne.s32.totalorder %s61, %s62
      %p73 = scmp.eq.s32.totalorder %s27, 0
      %p74 = por %p72, %p73
      %p75 = scmp.ne.s32.totalorder %s61, %s62
      %p76 = scmp.eq.s32.totalorder %s28, 1
      %p77 = por %p75, %p76
      %p79 = scmp.ne.s32.totalorder %s62, %s78
      %p80 = scmp.eq.s32.totalorder %s28, 0
      %p81 = por %p79, %p80
      %s83 = sadd.s32 %s82, 1
      %p86 = scmp.eq.s32.totalorder %s22, 1
      %p87 = scmp.ne.s32.totalorder %s82, %s84
      %p88 = scmp.eq.s32.totalorder %s22, 0
      %p89 = por %p87, %p88
      %p90 = scmp.ne.s32.totalorder %s82, %s84
      %p91 = scmp.eq.s32.totalorder %s27, 1
      %p92 = por %p90, %p91
      %p93 = scmp.ne.s32.totalorder %s84, %s85
      %p94 = scmp.eq.s32.totalorder %s27, 0
      %p95 = por %p93, %p94
      %p96 = scmp.ne.s32.totalorder %s84, %s85
      %p97 = scmp.eq.s32.totalorder %s28, 1
      %p98 = por %p96, %p97
      %p100 = scmp.ne.s32.totalorder %s85, %s99
      %p101 = scmp.eq.s32.totalorder %s28, 0
      %p102 = por %p100, %p101
      %s104 = sadd.s32 %s103, 1
      %p107 = scmp.eq.s32.totalorder %s22, 1
      %p108 = scmp.ne.s32.totalorder %s103, %s105
      %p109 = scmp.eq.s32.totalorder %s22, 0
      %p110 = por %p108, %p109
      %p111 = scmp.ne.s32.totalorder %s103, %s105
      %p112 = scmp.eq.s32.totalorder %s27, 1
      %p113 = por %p111, %p112
      %p114 = scmp.ne.s32.totalorder %s105, %s106
      %p115 = scmp.eq.s32.totalorder %s27, 0
      %p116 = por %p114, %p115
      %p117 = scmp.ne.s32.totalorder %s105, %s106
      %p118 = scmp.eq.s32.totalorder %s28, 1
      %p119 = por %p117, %p118
      %p121 = scmp.ne.s32.totalorder %s106, %s120
      %p122 = scmp.eq.s32.totalorder %s28, 0
      %p123 = por %p121, %p122
      %s125 = sadd.s32 %s124, 1
      %p128 = scmp.eq.s32.totalorder %s22, 1
      %p129 = scmp.ne.s32.totalorder %s124, %s126
      %p130 = scmp.eq.s32.totalorder %s22, 0
      %p131 = por %p129, %p130
      %p132 = scmp.ne.s32.totalorder %s124, %s126
      %p133 = scmp.eq.s32.totalorder %s27, 1
      %p134 = por %p132, %p133
      %p135 = scmp.ne.s32.totalorder %s126, %s127
      %p136 = scmp.eq.s32.totalorder %s27, 0
      %p137 = por %p135, %p136
      %p138 = scmp.ne.s32.totalorder %s126, %s127
      %p139 = scmp.eq.s32.totalorder %s28, 1
      %p140 = por %p138, %p139
      %p142 = scmp.ne.s32.totalorder %s127, %s141
      %p143 = scmp.eq.s32.totalorder %s28, 0
      %p144 = por %p142, %p143
      %s146 = sadd.s32 %s145, 1
      %p149 = scmp.eq.s32.totalorder %s22, 1
      %p150 = scmp.ne.s32.totalorder %s145, %s147
      %p151 = scmp.eq.s32.totalorder %s22, 0
      %p152 = por %p150, %p151
      %p153 = scmp.ne.s32.totalorder %s145, %s147
      %p154 = scmp.eq.s32.totalorder %s27, 1
      %p155 = por %p153, %p154
      %p156 = scmp.ne.s32.totalorder %s147, %s148
      %p157 = scmp.eq.s32.totalorder %s27, 0
      %p158 = por %p156, %p157
      %p159 = scmp.ne.s32.totalorder %s147, %s148
      %p160 = scmp.eq.s32.totalorder %s28, 1
      %p161 = por %p159, %p160
      %p163 = scmp.ne.s32.totalorder %s148, %s162
      %p164 = scmp.eq.s32.totalorder %s28, 0
      %p165 = por %p163, %p164
      %s166 = ssub.s32 %s22, %s29
      %p167 = scmp.eq.s32.totalorder %s166, 0
      %s169 = sadd.s32 %s168, 1
      %s170 = scalar_select %p167, %s168, %s169
      %p173 = pneg %p167
      %p174 = scmp.eq.s32.totalorder %s22, 1
      %p175 = por %p173, %p174
      %p176 = scmp.ne.s32.totalorder %s168, %s171
      %p177 = scmp.eq.s32.totalorder %s22, 0
      %p178 = por %p176, %p177
      %p179 = scmp.ne.s32.totalorder %s168, %s171
      %p180 = scmp.eq.s32.totalorder %s27, 1
      %p181 = por %p179, %p180
      %p182 = scmp.ne.s32.totalorder %s171, %s172
      %p183 = scmp.eq.s32.totalorder %s27, 0
      %p184 = por %p182, %p183
      %p185 = scmp.ne.s32.totalorder %s171, %s172
      %p186 = scmp.eq.s32.totalorder %s28, 1
      %p187 = por %p185, %p186
      %p189 = scmp.ne.s32.totalorder %s172, %s188
      %p190 = scmp.eq.s32.totalorder %s28, 0
      %p191 = por %p189, %p190
      %p192 = scmp.le.s32.totalorder 1, %s22
      %p193 = scmp.lt.s32.totalorder %s22, 3
      %p194 = pnand %p192, %p193
      %p195 = pneg %p194
      // Predicated region
      $region9: #{tpu_custom_call.1} parent=5 // pred_check
        _
      $region10: #{tpu_custom_call.1} parent=5 // pred_check_branch
        %197 = sbr.rel (%p194) target = $region12
      $region11: #{tpu_custom_call.1} parent=5 // pred_region
        %s198 = ssub.s32 %s22, 1
        // Predicated region
        $region13: #{tpu_custom_call.1} parent=11 // pred_check
          %p199 = pneg %p95
        $region14: #{tpu_custom_call.1} parent=11 // pred_check_branch
          %201 = sbr.rel (%p199) target = $region16
        $region15: #{tpu_custom_call.1} parent=11 // pred_region
          %203 = vsyncadd [#allocation8], 0
          %s204 = sshll.u32 %s2, 4
          %s205 = int_to_ptr.hbm [resolvable:$true] %s204
          %s206 = sshll.u32 [#allocation9], 4
          %s207 = int_to_ptr.vmem [resolvable:$true] %s206
          %212 = dma.hbm_to_vmem [thread:$0]  %s205, 6144, %s207, [#allocation8], 64, 64, 4
        $region16: #{tpu_custom_call.1} parent=11 // pred_fallthru
          _
        // Predicated region
        $region17: #{tpu_custom_call.1} parent=11 // pred_check
          %p213 = pneg %p116
        $region18: #{tpu_custom_call.1} parent=11 // pred_check_branch
          %215 = sbr.rel (%p213) target = $region20
        $region19: #{tpu_custom_call.1} parent=11 // pred_region
          _
        $region20: #{tpu_custom_call.1} parent=11 // pred_fallthru
          _
        // Predicated region
        $region21: #{tpu_custom_call.1} parent=11 // pred_check
          %p216 = pneg %p137
        $region22: #{tpu_custom_call.1} parent=11 // pred_check_branch
          %218 = sbr.rel (%p216) target = $region24
        $region23: #{tpu_custom_call.1} parent=11 // pred_region
          %220 = vsyncadd [#allocation11], 0
          %s221 = sshll.u32 %s4, 4
          %s222 = int_to_ptr.hbm [resolvable:$true] %s221
          %s223 = sshll.u32 [#allocation10], 4
          %s224 = int_to_ptr.vmem [resolvable:$true] %s223
          %229 = dma.hbm_to_vmem [thread:$0]  %s222, 3072, %s224, [#allocation11], 64, 64, 4
        $region24: #{tpu_custom_call.1} parent=11 // pred_fallthru
          _
        // Predicated region
        $region25: #{tpu_custom_call.1} parent=11 // pred_check
          %p230 = pneg %p158
        $region26: #{tpu_custom_call.1} parent=11 // pred_check_branch
          %232 = sbr.rel (%p230) target = $region28
        $region27: #{tpu_custom_call.1} parent=11 // pred_region
          _
        $region28: #{tpu_custom_call.1} parent=11 // pred_fallthru
          _
      $region12: #{tpu_custom_call.1} parent=5 // pred_fallthru
        _
      %p233 = scmp.lt.s32.totalorder %s22, 2
      // Predicated region
      $region29: #{tpu_custom_call.1} parent=5 // pred_check
        %p234 = pneg %p233
      $region30: #{tpu_custom_call.1} parent=5 // pred_check_branch
        %236 = sbr.rel (%p234) target = $region32
      $region31: #{tpu_custom_call.1} parent=5 // pred_region
        // Predicated region
        $region33: #{tpu_custom_call.1} parent=31 // pred_check
          %p237 = pneg %p42
        $region34: #{tpu_custom_call.1} parent=31 // pred_check_branch
          %239 = sbr.rel (%p237) target = $region36
        $region35: #{tpu_custom_call.1} parent=31 // pred_region
          %s240 = sand.u32 %s32, 1
          %s241 = scalar_lea.sflag [#allocation5], %s240
          %s242 = sand.u32 %s32, 1
          %s243 = smul.addr %s242, 8
          %s244 = scalar_lea.vmem [#allocation4], %s243
          %246 = vsyncadd %s241, 0
          %s247 = smul.addr %s22, 2
          %s248 = smul.addr %s247, 4
          %s249 = scalar_lea.hbm %s0, %s248
          %s250 = sshll.u32 %s249, 4
          %s251 = int_to_ptr.hbm [resolvable:$true] %s250
          %s252 = sshll.u32 %s244, 4
          %s253 = int_to_ptr.vmem [resolvable:$true] %s252
          %258 = dma.hbm_to_vmem [thread:$0]  %s251, 128, %s253, %s241, 64, 64, 4
        $region36: #{tpu_custom_call.1} parent=31 // pred_fallthru
          _
        // Predicated region
        $region37: #{tpu_custom_call.1} parent=31 // pred_check
          %p259 = pneg %p68
        $region38: #{tpu_custom_call.1} parent=31 // pred_check_branch
          %261 = sbr.rel (%p259) target = $region40
        $region39: #{tpu_custom_call.1} parent=31 // pred_region
          %s262 = sand.u32 %s22, 1
          %s263 = scalar_lea.sflag [#allocation8], %s262
          %s264 = sand.u32 %s58, 1
          %s265 = smul.addr %s264, 8
          %s266 = scalar_lea.vmem [#allocation7], %s265
          %268 = vsyncadd %s263, 0
          %s269 = smul.addr %s22, 2
          %s270 = smul.addr %s269, 4
          %s271 = scalar_lea.hbm %s1, %s270
          %s272 = sshll.u32 %s271, 4
          %s273 = int_to_ptr.hbm [resolvable:$true] %s272
          %s274 = sshll.u32 %s266, 4
          %s275 = int_to_ptr.vmem [resolvable:$true] %s274
          %280 = dma.hbm_to_vmem [thread:$0]  %s273, 128, %s275, %s263, 64, 64, 4
        $region40: #{tpu_custom_call.1} parent=31 // pred_fallthru
          _
      $region32: #{tpu_custom_call.1} parent=5 // pred_fallthru
        _
      %p281 = scmp.le.s32.totalorder 1, %s22
      %p282 = scmp.lt.s32.totalorder %s22, 3
      %p283 = pnand %p281, %p282
      %p284 = pneg %p283
      // Predicated region
      $region41: #{tpu_custom_call.1} parent=5 // pred_check
        _
      $region42: #{tpu_custom_call.1} parent=5 // pred_check_branch
        %286 = sbr.rel (%p283) target = $region44
      $region43: #{tpu_custom_call.1} parent=5 // pred_region
        %s287 = ssub.s32 %s22, 1
        %s288 = sand.u32 %s35, 1
        %s289 = scalar_lea.sflag [#allocation5], %s288
        %s290 = sand.u32 %s35, 1
        %s291 = smul.addr %s290, 8
        %s292 = scalar_lea.vmem [#allocation4], %s291
        // Predicated region
        $region45: #{tpu_custom_call.1} parent=43 // pred_check
          %p293 = pneg %p48
        $region46: #{tpu_custom_call.1} parent=43 // pred_check_branch
          %295 = sbr.rel (%p293) target = $region48
        $region47: #{tpu_custom_call.1} parent=43 // pred_region
          %297 = dma.done %s289, 128
        $region48: #{tpu_custom_call.1} parent=43 // pred_fallthru
          _
        %s298 = sand.u32 %s27, 1
        %s299 = scalar_lea.sflag [#allocation8], %s298
        %s300 = sand.u32 %s61, 1
        %s301 = smul.addr %s300, 8
        %s302 = scalar_lea.vmem [#allocation7], %s301
        // Predicated region
        $region49: #{tpu_custom_call.1} parent=43 // pred_check
          %p303 = pneg %p74
        $region50: #{tpu_custom_call.1} parent=43 // pred_check_branch
          %305 = sbr.rel (%p303) target = $region52
        $region51: #{tpu_custom_call.1} parent=43 // pred_region
          %307 = dma.done %s299, 128
        $region52: #{tpu_custom_call.1} parent=43 // pred_fallthru
          _
        // Predicated region
        $region53: #{tpu_custom_call.1} parent=43 // pred_check
          %p308 = pneg %p95
        $region54: #{tpu_custom_call.1} parent=43 // pred_check_branch
          %310 = sbr.rel (%p308) target = $region56
        $region55: #{tpu_custom_call.1} parent=43 // pred_region
          %312 = dma.done [#allocation8], 6144
        $region56: #{tpu_custom_call.1} parent=43 // pred_fallthru
          _
        // Predicated region
        $region57: #{tpu_custom_call.1} parent=43 // pred_check
          %p313 = pneg %p137
        $region58: #{tpu_custom_call.1} parent=43 // pred_check_branch
          %315 = sbr.rel (%p313) target = $region60
        $region59: #{tpu_custom_call.1} parent=43 // pred_region
          %317 = dma.done [#allocation11], 3072
        $region60: #{tpu_custom_call.1} parent=43 // pred_fallthru
          _
        %s318 = sand.u32 %s35, 1
        %s319 = scalar_lea.sflag [#allocation5], %s318
        %s320 = sand.u32 %s35, 1
        %s321 = smul.addr %s320, 8
        %s322 = scalar_lea.vmem [#allocation4], %s321
        %p323 = pneg %p48
        %p324 = pneg %p45
        %s325 = sand.u32 %s27, 1
        %s326 = scalar_lea.sflag [#allocation8], %s325
        %s327 = sand.u32 %s61, 1
        %s328 = smul.addr %s327, 8
        %s329 = scalar_lea.vmem [#allocation7], %s328
        %p330 = pneg %p74
        %p331 = pneg %p71
        %p332 = pneg %p95
        %p333 = pneg %p92
        %p334 = pneg %p116
        %p335 = pneg %p113
        %p336 = pneg %p137
        %p337 = pneg %p134
        %p338 = pneg %p158
        %p339 = pneg %p155
        %p340 = pneg %p184
        %p341 = pneg %p181
        %s342 = sand.u32 %s171, 1
        %s343 = scalar_lea.sflag [#allocation6], %s342
        %s344 = sand.u32 %s171, 1
        %s345 = smul.addr %s344, 16
        %s346 = scalar_lea.vmem [#allocation12], %s345
        %vm348 = vcmask 1040384
        %vm349 = vsmask.f32 256
        %vm350 = vmand %vm348, %vm349
        %vm351 = vcmask 1044484
        %vm352 = vsmask.f32 4352
        %vm353 = vmand %vm351, %vm352
        %vm354 = vmor %vm353, %vm350
        %v355 = vld [vmem:[#allocation2] sm:$0x11]
        %v356 = vsel %vm354, 0, %v355
        %357 = vst [vmem:[#allocation2] sm:$0x11] %v356
        %vm358 = vsmask.f32 7938
        %vm359 = vmand %vm348, %vm358
        %vm360 = vsmask.f32 7954
        %vm361 = vmand %vm351, %vm360
        %vm362 = vmor %vm361, %vm359
        %v363 = vld [vmem:[#allocation2 + $0x10] sm:$0x11]
        %v364 = vsel %vm362, 0, %v363
        %365 = vst [vmem:[#allocation2 + $0x10] sm:$0x11] %v364
        %v366 = vld [vmem:[#allocation3] sm:$0x1]
        %v367 = vsel %vm350, 0, %v366
        %368 = vst [vmem:[#allocation3] sm:$0x1] %v367
        %v369 = vld [vmem:[#allocation3 + $0x8] sm:$0x1]
        %v370 = vsel %vm359, 0, %v369
        %371 = vst [vmem:[#allocation3 + $0x8] sm:$0x1] %v370
        %v372 = vld [vmem:[%s292] sm:$0xf]
        %v373 = vld [vmem:[%s292 + $0x4] sm:$0xf]
        %vm374 = vsmask.f32 4368
        %vm375 = vmor %vm349, %vm374
        %v377 = vshrl.u32 %v372, 16
        %v379 = vrot.slane %v377, 7
        %v380 = vshll.u32 %v372, 16
        %v382 = vor.u32 %v379, %v380
        %v383 = vrot.slane %v379, 4
        %v385 = vshrl.u32 %v373, 16
        %v387 = vrot.slane %v385, 7
        %v388 = vshll.u32 %v373, 16
        %v390 = vor.u32 %v387, %v388
        %v391 = vsel %vm375, %v383, %v390
        %v392 = vrot.slane %v387, 4
        %vm396 = vcmask 1043456
        %vm397 = vmand %vm396, %vm358
        %v398 = vld [vmem:[#allocation2] sm:$0xf]
        %v399 = vsel %vm397, %v382, %v398
        %400 = vst [vmem:[#allocation2] sm:$0xf] %v399
        %401 = vst [vmem:[#allocation2 + $0x8] sm:$0xf] %v391
        %v402 = vld [vmem:[#allocation2 + $0x10] sm:$0x1]
        %v403 = vsel %vm350, %v392, %v402
        %404 = vst [vmem:[#allocation2 + $0x10] sm:$0x1] %v403
        %v405 = vld [vmem:[%s302] sm:$0xf]
        %v406 = vld [vmem:[%s302 + $0x4] sm:$0xf]
        %v408 = vshrl.u32 %v405, 16
        %v410 = vrot.slane %v408, 7
        %v411 = vshll.u32 %v405, 16
        %v413 = vor.u32 %v410, %v411
        %v414 = vrot.slane %v410, 4
        %v416 = vshrl.u32 %v406, 16
        %v418 = vrot.slane %v416, 7
        %v419 = vshll.u32 %v406, 16
        %v421 = vor.u32 %v418, %v419
        %v422 = vsel %vm375, %v414, %v421
        %v423 = vrot.slane %v418, 4
        %v427 = vld [vmem:[#allocation2 + $0x4] sm:$0xf]
        %v428 = vsel %vm397, %v413, %v427
        %429 = vst [vmem:[#allocation2 + $0x4] sm:$0xf] %v428
        %430 = vst [vmem:[#allocation2 + $0xc] sm:$0xf] %v422
        %v431 = vld [vmem:[#allocation2 + $0x14] sm:$0x1]
        %v432 = vsel %vm350, %v423, %v431
        %433 = vst [vmem:[#allocation2 + $0x14] sm:$0x1] %v432
        %v434 = vld [vmem:[#allocation2] sm:$0xff]
        %v435 = vld [vmem:[#allocation2 + $0x8] sm:$0xff]
        %v436 = vld [vmem:[#allocation9] sm:$0xf]
        %v437 = vld [vmem:[#allocation9 + $0x4] sm:$0xf]
        %v438 = vld [vmem:[#allocation9 + $0x8] sm:$0xf]
        %v439 = vld [vmem:[#allocation9 + $0xc] sm:$0xf]
        %v440 = vld [vmem:[#allocation9 + $0x10] sm:$0xf]
        %v441 = vld [vmem:[#allocation9 + $0x14] sm:$0xf]
        %v442 = vld [vmem:[#allocation9 + $0x18] sm:$0xf]
        %v443 = vld [vmem:[#allocation9 + $0x1c] sm:$0xf]
        %v444 = vld [vmem:[#allocation9 + $0x20] sm:$0xf]
        %v445 = vld [vmem:[#allocation9 + $0x24] sm:$0xf]
        %v446 = vld [vmem:[#allocation9 + $0x28] sm:$0xf]
        %v447 = vld [vmem:[#allocation9 + $0x2c] sm:$0xf]
        %v448 = vld [vmem:[#allocation9 + $0x30] sm:$0xf]
        %v449 = vld [vmem:[#allocation9 + $0x34] sm:$0xf]
        %v450 = vld [vmem:[#allocation9 + $0x38] sm:$0xf]
        %v451 = vld [vmem:[#allocation9 + $0x3c] sm:$0xf]
        %v452 = vld [vmem:[#allocation9 + $0x40] sm:$0xf]
        %v453 = vld [vmem:[#allocation9 + $0x44] sm:$0xf]
        %v454 = vld [vmem:[#allocation9 + $0x48] sm:$0xf]
        %v455 = vld [vmem:[#allocation9 + $0x4c] sm:$0xf]
        %v456 = vld [vmem:[#allocation9 + $0x50] sm:$0xf]
        %v457 = vld [vmem:[#allocation9 + $0x54] sm:$0xf]
        %v458 = vld [vmem:[#allocation9 + $0x58] sm:$0xf]
        %v459 = vld [vmem:[#allocation9 + $0x5c] sm:$0xf]
        %v460 = vld [vmem:[#allocation9 + $0x60] sm:$0xf]
        %v461 = vld [vmem:[#allocation9 + $0x64] sm:$0xf]
        %v462 = vld [vmem:[#allocation9 + $0x68] sm:$0xf]
        %v463 = vld [vmem:[#allocation9 + $0x6c] sm:$0xf]
        %v464 = vld [vmem:[#allocation9 + $0x70] sm:$0xf]
        %v465 = vld [vmem:[#allocation9 + $0x74] sm:$0xf]
        %v466 = vld [vmem:[#allocation9 + $0x78] sm:$0xf]
        %v467 = vld [vmem:[#allocation9 + $0x7c] sm:$0xf]
        %v468 = vld [vmem:[#allocation2 + $0x10] sm:$0x11]
        %s469 = scalar_lea.vmem [#allocation9], 128
        %v470 = vld [vmem:[%s469] sm:$0xf]
        %v471 = vld [vmem:[%s469 + $0x4] sm:$0xf]
        %v472 = vld [vmem:[%s469 + $0x8] sm:$0xf]
        %v473 = vld [vmem:[%s469 + $0xc] sm:$0xf]
        %v474 = vld [vmem:[%s469 + $0x10] sm:$0xf]
        %v475 = vld [vmem:[%s469 + $0x14] sm:$0xf]
        %v476 = vld [vmem:[%s469 + $0x18] sm:$0xf]
        %v477 = vld [vmem:[%s469 + $0x1c] sm:$0xf]
        %v478 = vld [vmem:[%s469 + $0x20] sm:$0xf]
        %v479 = vld [vmem:[%s469 + $0x24] sm:$0xf]
        %v480 = vld [vmem:[%s469 + $0x28] sm:$0xf]
        %v481 = vld [vmem:[%s469 + $0x2c] sm:$0xf]
        %v482 = vld [vmem:[%s469 + $0x30] sm:$0xf]
        %v483 = vld [vmem:[%s469 + $0x34] sm:$0xf]
        %v484 = vld [vmem:[%s469 + $0x38] sm:$0xf]
        %v485 = vld [vmem:[%s469 + $0x3c] sm:$0xf]
        %v486 = vld [vmem:[%s469 + $0x40] sm:$0xf]
        %v487 = vld [vmem:[%s469 + $0x44] sm:$0xf]
        %v488 = vld [vmem:[%s469 + $0x48] sm:$0xf]
        %v489 = vld [vmem:[%s469 + $0x4c] sm:$0xf]
        %v490 = vld [vmem:[%s469 + $0x50] sm:$0xf]
        %v491 = vld [vmem:[%s469 + $0x54] sm:$0xf]
        %v492 = vld [vmem:[%s469 + $0x58] sm:$0xf]
        %v493 = vld [vmem:[%s469 + $0x5c] sm:$0xf]
        %v494 = vld [vmem:[%s469 + $0x60] sm:$0xf]
        %v495 = vld [vmem:[%s469 + $0x64] sm:$0xf]
        %v496 = vld [vmem:[%s469 + $0x68] sm:$0xf]
        %v497 = vld [vmem:[%s469 + $0x6c] sm:$0xf]
        %v498 = vld [vmem:[%s469 + $0x70] sm:$0xf]
        %v499 = vld [vmem:[%s469 + $0x74] sm:$0xf]
        %v500 = vld [vmem:[%s469 + $0x78] sm:$0xf]
        %v501 = vld [vmem:[%s469 + $0x7c] sm:$0xf]
        %v505 = vunpack.c.l.b16 %v434
        %v506 = vunpack.c.h.b16 %v434
        %v507 = vunpack.c.l.b16 %v435
        %v508 = vunpack.c.h.b16 %v435
        %v509 = vunpack.c.l.b16 %v468
        %v510 = vunpack.c.h.b16 %v468
        %v511 = vpack.c.b16 %v507, %v505
        %v512 = vpack.c.b16 %v508, %v506
        %v513 = vpack.c.b16 %v509, %v509
        %v514 = vpack.c.b16 %v510, %v510
        %vm515 = vsmask.f32 7424
        %v517 = vshrl.u32 %v511, 16
        %v519 = vshll.u32 %v511, 16
        %v521 = vrot.slane %v519, 1
        %v522 = vor.u32 %v517, %v521
        %v524 = vshll.u32 %v513, 16
        %v526 = vrot.slane %v524, 1
        %v527 = vsel %vm515, %v522, %v526
        %v529 = vshrl.u32 %v512, 16
        %v531 = vshll.u32 %v512, 16
        %v533 = vrot.slane %v531, 1
        %v534 = vor.u32 %v529, %v533
        %v536 = vshll.u32 %v514, 16
        %v538 = vrot.slane %v536, 1
        %v539 = vsel %vm515, %v534, %v538
        %v574 = vunpack.c.l.b16 %v470
        %v575 = vunpack.c.l.b16 %v471
        %v576 = vunpack.c.l.b16 %v472
        %v577 = vunpack.c.l.b16 %v473
        %v578 = vunpack.c.l.b16 %v474
        %v579 = vunpack.c.l.b16 %v475
        %v580 = vunpack.c.l.b16 %v476
        %v581 = vunpack.c.l.b16 %v477
        %v582 = vunpack.c.l.b16 %v478
        %v583 = vunpack.c.l.b16 %v479
        %v584 = vunpack.c.l.b16 %v480
        %v585 = vunpack.c.l.b16 %v481
        %v586 = vunpack.c.l.b16 %v482
        %v587 = vunpack.c.l.b16 %v483
        %v588 = vunpack.c.l.b16 %v484
        %v589 = vunpack.c.l.b16 %v485
        %v590 = vunpack.c.l.b16 %v486
        %v591 = vunpack.c.l.b16 %v487
        %v592 = vunpack.c.l.b16 %v488
        %v593 = vunpack.c.l.b16 %v489
        %v594 = vunpack.c.l.b16 %v490
        %v595 = vunpack.c.l.b16 %v491
        %v596 = vunpack.c.l.b16 %v492
        %v597 = vunpack.c.l.b16 %v493
        %v598 = vunpack.c.l.b16 %v494
        %v599 = vunpack.c.l.b16 %v495
        %v600 = vunpack.c.l.b16 %v496
        %v601 = vunpack.c.l.b16 %v497
        %v602 = vunpack.c.l.b16 %v498
        %v603 = vunpack.c.l.b16 %v499
        %v604 = vunpack.c.l.b16 %v500
        %v605 = vunpack.c.l.b16 %v501
        %v606 = vpack.c.b16 %v575, %v574
        %v607 = vpack.c.b16 %v577, %v576
        %v608 = vpack.c.b16 %v579, %v578
        %v609 = vpack.c.b16 %v581, %v580
        %v610 = vpack.c.b16 %v583, %v582
        %v611 = vpack.c.b16 %v585, %v584
        %v612 = vpack.c.b16 %v587, %v586
        %v613 = vpack.c.b16 %v589, %v588
        %v614 = vpack.c.b16 %v591, %v590
        %v615 = vpack.c.b16 %v593, %v592
        %v616 = vpack.c.b16 %v595, %v594
        %v617 = vpack.c.b16 %v597, %v596
        %v618 = vpack.c.b16 %v599, %v598
        %v619 = vpack.c.b16 %v601, %v600
        %v620 = vpack.c.b16 %v603, %v602
        %v621 = vpack.c.b16 %v605, %v604
        %638 = vmatpush.bf16.msra.mxu0 %v613
        %639 = vmatpush.bf16.msra.mxu0 %v612
        %640 = vmatpush.bf16.msra.mxu0 %v611
        %641 = vmatpush.bf16.msra.mxu0 %v610
        %642 = vmatpush.bf16.msra.mxu0 %v609
        %643 = vmatpush.bf16.msra.mxu0 %v608
        %644 = vmatpush.bf16.msra.mxu0 %v607
        %645 = vmatpush.bf16.msra.mxu0 %v606
        %646 = vmatmul.bf16.gmra.mxu0 %v527
        %v647 = vpop.f32.mrf.mxu0
        %v648 = vadd.f32 0.0, %v647
        %v649 = vpop.f32.mrf.mxu0
        %v650 = vadd.f32 0.0, %v649
        %651 = vdwg.mxu0
        %652 = vmatpush.bf16.msra.mxu0 %v621
        %653 = vmatpush.bf16.msra.mxu0 %v620
        %654 = vmatpush.bf16.msra.mxu0 %v619
        %655 = vmatpush.bf16.msra.mxu0 %v618
        %656 = vmatpush.bf16.msra.mxu0 %v617
        %657 = vmatpush.bf16.msra.mxu0 %v616
        %658 = vmatpush.bf16.msra.mxu0 %v615
        %659 = vmatpush.bf16.msra.mxu0 %v614
        %660 = vmatmul.bf16.gmra.mxu0 %v539
        %v661 = vpop.f32.mrf.mxu0
        %v662 = vadd.f32 %v648, %v661
        %v663 = vpop.f32.mrf.mxu0
        %v664 = vadd.f32 %v650, %v663
        %665 = vdwg.mxu0
        %v700 = vunpack.c.l.b16 %v436
        %v701 = vunpack.c.l.b16 %v437
        %v702 = vunpack.c.l.b16 %v438
        %v703 = vunpack.c.l.b16 %v439
        %v704 = vunpack.c.l.b16 %v440
        %v705 = vunpack.c.l.b16 %v441
        %v706 = vunpack.c.l.b16 %v442
        %v707 = vunpack.c.l.b16 %v443
        %v708 = vunpack.c.l.b16 %v444
        %v709 = vunpack.c.l.b16 %v445
        %v710 = vunpack.c.l.b16 %v446
        %v711 = vunpack.c.l.b16 %v447
        %v712 = vunpack.c.l.b16 %v448
        %v713 = vunpack.c.l.b16 %v449
        %v714 = vunpack.c.l.b16 %v450
        %v715 = vunpack.c.l.b16 %v451
        %v716 = vunpack.c.l.b16 %v452
        %v717 = vunpack.c.l.b16 %v453
        %v718 = vunpack.c.l.b16 %v454
        %v719 = vunpack.c.l.b16 %v455
        %v720 = vunpack.c.l.b16 %v456
        %v721 = vunpack.c.l.b16 %v457
        %v722 = vunpack.c.l.b16 %v458
        %v723 = vunpack.c.l.b16 %v459
        %v724 = vunpack.c.l.b16 %v460
        %v725 = vunpack.c.l.b16 %v461
        %v726 = vunpack.c.l.b16 %v462
        %v727 = vunpack.c.l.b16 %v463
        %v728 = vunpack.c.l.b16 %v464
        %v729 = vunpack.c.l.b16 %v465
        %v730 = vunpack.c.l.b16 %v466
        %v731 = vunpack.c.l.b16 %v467
        %v732 = vpack.c.b16 %v701, %v700
        %v733 = vpack.c.b16 %v703, %v702
        %v734 = vpack.c.b16 %v705, %v704
        %v735 = vpack.c.b16 %v707, %v706
        %v736 = vpack.c.b16 %v709, %v708
        %v737 = vpack.c.b16 %v711, %v710
        %v738 = vpack.c.b16 %v713, %v712
        %v739 = vpack.c.b16 %v715, %v714
        %v740 = vpack.c.b16 %v717, %v716
        %v741 = vpack.c.b16 %v719, %v718
        %v742 = vpack.c.b16 %v721, %v720
        %v743 = vpack.c.b16 %v723, %v722
        %v744 = vpack.c.b16 %v725, %v724
        %v745 = vpack.c.b16 %v727, %v726
        %v746 = vpack.c.b16 %v729, %v728
        %v747 = vpack.c.b16 %v731, %v730
        %764 = vmatpush.bf16.msra.mxu0 %v739
        %765 = vmatpush.bf16.msra.mxu0 %v738
        %766 = vmatpush.bf16.msra.mxu0 %v737
        %767 = vmatpush.bf16.msra.mxu0 %v736
        %768 = vmatpush.bf16.msra.mxu0 %v735
        %769 = vmatpush.bf16.msra.mxu0 %v734
        %770 = vmatpush.bf16.msra.mxu0 %v733
        %771 = vmatpush.bf16.msra.mxu0 %v732
        %772 = vmatmul.bf16.gmra.mxu0 %v511
        %v773 = vpop.f32.mrf.mxu0
        %v774 = vadd.f32 %v662, %v773
        %v775 = vpop.f32.mrf.mxu0
        %v776 = vadd.f32 %v664, %v775
        %777 = vdwg.mxu0
        %778 = vmatpush.bf16.msra.mxu0 %v747
        %779 = vmatpush.bf16.msra.mxu0 %v746
        %780 = vmatpush.bf16.msra.mxu0 %v745
        %781 = vmatpush.bf16.msra.mxu0 %v744
        %782 = vmatpush.bf16.msra.mxu0 %v743
        %783 = vmatpush.bf16.msra.mxu0 %v742
        %784 = vmatpush.bf16.msra.mxu0 %v741
        %785 = vmatpush.bf16.msra.mxu0 %v740
        %786 = vmatmul.bf16.gmra.mxu0 %v512
        %v787 = vpop.f32.mrf.mxu0
        %v788 = vadd.f32 %v774, %v787
        %v789 = vpop.f32.mrf.mxu0
        %v790 = vadd.f32 %v776, %v789
        %791 = vdwg.mxu0
        %v792 = vld [vmem:[#allocation2] sm:$0xee]
        %s793 = scalar_lea.vmem [#allocation9], 256
        %v794 = vld [vmem:[%s793] sm:$0xf]
        %v795 = vld [vmem:[%s793 + $0x4] sm:$0xf]
        %v796 = vld [vmem:[%s793 + $0x8] sm:$0xf]
        %v797 = vld [vmem:[%s793 + $0xc] sm:$0xf]
        %v798 = vld [vmem:[%s793 + $0x10] sm:$0xf]
        %v799 = vld [vmem:[%s793 + $0x14] sm:$0xf]
        %v800 = vld [vmem:[%s793 + $0x18] sm:$0xf]
        %v801 = vld [vmem:[%s793 + $0x1c] sm:$0xf]
        %v802 = vld [vmem:[%s793 + $0x20] sm:$0xf]
        %v803 = vld [vmem:[%s793 + $0x24] sm:$0xf]
        %v804 = vld [vmem:[%s793 + $0x28] sm:$0xf]
        %v805 = vld [vmem:[%s793 + $0x2c] sm:$0xf]
        %v806 = vld [vmem:[%s793 + $0x30] sm:$0xf]
        %v807 = vld [vmem:[%s793 + $0x34] sm:$0xf]
        %v808 = vld [vmem:[%s793 + $0x38] sm:$0xf]
        %v809 = vld [vmem:[%s793 + $0x3c] sm:$0xf]
        %v810 = vld [vmem:[%s793 + $0x40] sm:$0xf]
        %v811 = vld [vmem:[%s793 + $0x44] sm:$0xf]
        %v812 = vld [vmem:[%s793 + $0x48] sm:$0xf]
        %v813 = vld [vmem:[%s793 + $0x4c] sm:$0xf]
        %v814 = vld [vmem:[%s793 + $0x50] sm:$0xf]
        %v815 = vld [vmem:[%s793 + $0x54] sm:$0xf]
        %v816 = vld [vmem:[%s793 + $0x58] sm:$0xf]
        %v817 = vld [vmem:[%s793 + $0x5c] sm:$0xf]
        %v818 = vld [vmem:[%s793 + $0x60] sm:$0xf]
        %v819 = vld [vmem:[%s793 + $0x64] sm:$0xf]
        %v820 = vld [vmem:[%s793 + $0x68] sm:$0xf]
        %v821 = vld [vmem:[%s793 + $0x6c] sm:$0xf]
        %v822 = vld [vmem:[%s793 + $0x70] sm:$0xf]
        %v823 = vld [vmem:[%s793 + $0x74] sm:$0xf]
        %v824 = vld [vmem:[%s793 + $0x78] sm:$0xf]
        %v825 = vld [vmem:[%s793 + $0x7c] sm:$0xf]
        %v827 = vunpack.c.l.b16 %v792
        %v828 = vunpack.c.h.b16 %v792
        %v829 = vpack.c.b16 %v507, %v827
        %v830 = vpack.c.b16 %v508, %v828
        %vm831 = vcmask 1046528
        %v832 = vrot.slane %v829, 1
        %v833 = vrot.slane %v513, 1
        %v834 = vsel %vm831, %v832, %v833
        %v835 = vrot.slane %v830, 1
        %v836 = vrot.slane %v514, 1
        %v837 = vsel %vm831, %v835, %v836
        %v872 = vunpack.c.l.b16 %v794
        %v873 = vunpack.c.l.b16 %v795
        %v874 = vunpack.c.l.b16 %v796
        %v875 = vunpack.c.l.b16 %v797
        %v876 = vunpack.c.l.b16 %v798
        %v877 = vunpack.c.l.b16 %v799
        %v878 = vunpack.c.l.b16 %v800
        %v879 = vunpack.c.l.b16 %v801
        %v880 = vunpack.c.l.b16 %v802
        %v881 = vunpack.c.l.b16 %v803
        %v882 = vunpack.c.l.b16 %v804
        %v883 = vunpack.c.l.b16 %v805
        %v884 = vunpack.c.l.b16 %v806
        %v885 = vunpack.c.l.b16 %v807
        %v886 = vunpack.c.l.b16 %v808
        %v887 = vunpack.c.l.b16 %v809
        %v888 = vunpack.c.l.b16 %v810
        %v889 = vunpack.c.l.b16 %v811
        %v890 = vunpack.c.l.b16 %v812
        %v891 = vunpack.c.l.b16 %v813
        %v892 = vunpack.c.l.b16 %v814
        %v893 = vunpack.c.l.b16 %v815
        %v894 = vunpack.c.l.b16 %v816
        %v895 = vunpack.c.l.b16 %v817
        %v896 = vunpack.c.l.b16 %v818
        %v897 = vunpack.c.l.b16 %v819
        %v898 = vunpack.c.l.b16 %v820
        %v899 = vunpack.c.l.b16 %v821
        %v900 = vunpack.c.l.b16 %v822
        %v901 = vunpack.c.l.b16 %v823
        %v902 = vunpack.c.l.b16 %v824
        %v903 = vunpack.c.l.b16 %v825
        %v904 = vpack.c.b16 %v873, %v872
        %v905 = vpack.c.b16 %v875, %v874
        %v906 = vpack.c.b16 %v877, %v876
        %v907 = vpack.c.b16 %v879, %v878
        %v908 = vpack.c.b16 %v881, %v880
        %v909 = vpack.c.b16 %v883, %v882
        %v910 = vpack.c.b16 %v885, %v884
        %v911 = vpack.c.b16 %v887, %v886
        %v912 = vpack.c.b16 %v889, %v888
        %v913 = vpack.c.b16 %v891, %v890
        %v914 = vpack.c.b16 %v893, %v892
        %v915 = vpack.c.b16 %v895, %v894
        %v916 = vpack.c.b16 %v897, %v896
        %v917 = vpack.c.b16 %v899, %v898
        %v918 = vpack.c.b16 %v901, %v900
        %v919 = vpack.c.b16 %v903, %v902
        %936 = vmatpush.bf16.msra.mxu0 %v911
        %937 = vmatpush.bf16.msra.mxu0 %v910
        %938 = vmatpush.bf16.msra.mxu0 %v909
        %939 = vmatpush.bf16.msra.mxu0 %v908
        %940 = vmatpush.bf16.msra.mxu0 %v907
        %941 = vmatpush.bf16.msra.mxu0 %v906
        %942 = vmatpush.bf16.msra.mxu0 %v905
        %943 = vmatpush.bf16.msra.mxu0 %v904
        %944 = vmatmul.bf16.gmra.mxu0 %v834
        %v945 = vpop.f32.mrf.mxu0
        %v946 = vadd.f32 0.0, %v945
        %v947 = vpop.f32.mrf.mxu0
        %v948 = vadd.f32 0.0, %v947
        %949 = vdwg.mxu0
        %950 = vmatpush.bf16.msra.mxu0 %v919
        %951 = vmatpush.bf16.msra.mxu0 %v918
        %952 = vmatpush.bf16.msra.mxu0 %v917
        %953 = vmatpush.bf16.msra.mxu0 %v916
        %954 = vmatpush.bf16.msra.mxu0 %v915
        %955 = vmatpush.bf16.msra.mxu0 %v914
        %956 = vmatpush.bf16.msra.mxu0 %v913
        %957 = vmatpush.bf16.msra.mxu0 %v912
        %958 = vmatmul.bf16.gmra.mxu0 %v837
        %v959 = vpop.f32.mrf.mxu0
        %v960 = vadd.f32 %v946, %v959
        %v961 = vpop.f32.mrf.mxu0
        %v962 = vadd.f32 %v948, %v961
        %963 = vdwg.mxu0
        %v964 = vadd.f32 %v788, %v960
        %v965 = vadd.f32 %v790, %v962
        %v966 = vld [vmem:[%s3] sm:$0x1]
        %v968 = vperm.slane %v966, 0
        %v970 = vadd.f32 %v964, %v968
        %v971 = vadd.f32 %v965, %v968
        %v972 = vmax.f32 %v970, 0.0
        %v973 = vmax.f32 %v971, 0.0
        %v974 = vpack.c.bf16 %v972, %v972
        %v975 = vpack.c.bf16 %v973, %v973
        %v977 = vshrl.u32 %v974, 16
        %v979 = vrot.slane %v977, 7
        %v980 = vshll.u32 %v974, 16
        %v982 = vor.u32 %v979, %v980
        %v983 = vrot.slane %v979, 4
        %v985 = vshrl.u32 %v975, 16
        %v987 = vrot.slane %v985, 7
        %v988 = vshll.u32 %v975, 16
        %v990 = vor.u32 %v987, %v988
        %v991 = vsel %vm375, %v983, %v990
        %v992 = vrot.slane %v987, 4
        %v996 = vld [vmem:[#allocation3] sm:$0xf]
        %v997 = vsel %vm397, %v982, %v996
        %998 = vst [vmem:[#allocation3] sm:$0xf] %v997
        %999 = vst [vmem:[#allocation3 + $0x4] sm:$0xf] %v991
        %v1000 = vld [vmem:[#allocation3 + $0x8] sm:$0x1]
        %v1001 = vsel %vm350, %v992, %v1000
        %1002 = vst [vmem:[#allocation3 + $0x8] sm:$0x1] %v1001
        %v1003 = vld [vmem:[#allocation3] sm:$0xf]
        %v1004 = vld [vmem:[#allocation3 + $0x4] sm:$0xf]
        %v1005 = vld [vmem:[#allocation10] sm:$0xf]
        %v1006 = vld [vmem:[#allocation10 + $0x4] sm:$0xf]
        %v1007 = vld [vmem:[#allocation10 + $0x8] sm:$0xf]
        %v1008 = vld [vmem:[#allocation10 + $0xc] sm:$0xf]
        %v1009 = vld [vmem:[#allocation10 + $0x10] sm:$0xf]
        %v1010 = vld [vmem:[#allocation10 + $0x14] sm:$0xf]
        %v1011 = vld [vmem:[#allocation10 + $0x18] sm:$0xf]
        %v1012 = vld [vmem:[#allocation10 + $0x1c] sm:$0xf]
        %v1013 = vld [vmem:[#allocation10 + $0x20] sm:$0xf]
        %v1014 = vld [vmem:[#allocation10 + $0x24] sm:$0xf]
        %v1015 = vld [vmem:[#allocation10 + $0x28] sm:$0xf]
        %v1016 = vld [vmem:[#allocation10 + $0x2c] sm:$0xf]
        %v1017 = vld [vmem:[#allocation10 + $0x30] sm:$0xf]
        %v1018 = vld [vmem:[#allocation10 + $0x34] sm:$0xf]
        %v1019 = vld [vmem:[#allocation10 + $0x38] sm:$0xf]
        %v1020 = vld [vmem:[#allocation10 + $0x3c] sm:$0xf]
        %v1021 = vld [vmem:[#allocation3 + $0x8] sm:$0x1]
        %s1022 = scalar_lea.vmem [#allocation10], 64
        %v1023 = vld [vmem:[%s1022] sm:$0xf]
        %v1024 = vld [vmem:[%s1022 + $0x4] sm:$0xf]
        %v1025 = vld [vmem:[%s1022 + $0x8] sm:$0xf]
        %v1026 = vld [vmem:[%s1022 + $0xc] sm:$0xf]
        %v1027 = vld [vmem:[%s1022 + $0x10] sm:$0xf]
        %v1028 = vld [vmem:[%s1022 + $0x14] sm:$0xf]
        %v1029 = vld [vmem:[%s1022 + $0x18] sm:$0xf]
        %v1030 = vld [vmem:[%s1022 + $0x1c] sm:$0xf]
        %v1031 = vld [vmem:[%s1022 + $0x20] sm:$0xf]
        %v1032 = vld [vmem:[%s1022 + $0x24] sm:$0xf]
        %v1033 = vld [vmem:[%s1022 + $0x28] sm:$0xf]
        %v1034 = vld [vmem:[%s1022 + $0x2c] sm:$0xf]
        %v1035 = vld [vmem:[%s1022 + $0x30] sm:$0xf]
        %v1036 = vld [vmem:[%s1022 + $0x34] sm:$0xf]
        %v1037 = vld [vmem:[%s1022 + $0x38] sm:$0xf]
        %v1038 = vld [vmem:[%s1022 + $0x3c] sm:$0xf]
        %v1042 = vunpack.c.l.b16 %v1003
        %v1043 = vunpack.c.l.b16 %v1004
        %v1044 = vunpack.c.l.b16 %v1021
        %v1045 = vpack.c.b16 %v1043, %v1042
        %v1046 = vpack.c.b16 %v1044, %v1044
        %v1048 = vshrl.u32 %v1045, 16
        %v1050 = vshll.u32 %v1045, 16
        %v1052 = vrot.slane %v1050, 1
        %v1053 = vor.u32 %v1048, %v1052
        %v1055 = vshll.u32 %v1046, 16
        %v1057 = vrot.slane %v1055, 1
        %v1058 = vsel %vm515, %v1053, %v1057
        %v1076 = vunpack.c.l.b16 %v1023
        %v1077 = vunpack.c.l.b16 %v1024
        %v1078 = vunpack.c.l.b16 %v1025
        %v1079 = vunpack.c.l.b16 %v1026
        %v1080 = vunpack.c.l.b16 %v1027
        %v1081 = vunpack.c.l.b16 %v1028
        %v1082 = vunpack.c.l.b16 %v1029
        %v1083 = vunpack.c.l.b16 %v1030
        %v1084 = vunpack.c.l.b16 %v1031
        %v1085 = vunpack.c.l.b16 %v1032
        %v1086 = vunpack.c.l.b16 %v1033
        %v1087 = vunpack.c.l.b16 %v1034
        %v1088 = vunpack.c.l.b16 %v1035
        %v1089 = vunpack.c.l.b16 %v1036
        %v1090 = vunpack.c.l.b16 %v1037
        %v1091 = vunpack.c.l.b16 %v1038
        %v1092 = vpack.c.b16 %v1077, %v1076
        %v1093 = vpack.c.b16 %v1079, %v1078
        %v1094 = vpack.c.b16 %v1081, %v1080
        %v1095 = vpack.c.b16 %v1083, %v1082
        %v1096 = vpack.c.b16 %v1085, %v1084
        %v1097 = vpack.c.b16 %v1087, %v1086
        %v1098 = vpack.c.b16 %v1089, %v1088
        %v1099 = vpack.c.b16 %v1091, %v1090
        %1108 = vmatpush.bf16.msra.mxu0 %v1099
        %1109 = vmatpush.bf16.msra.mxu0 %v1098
        %1110 = vmatpush.bf16.msra.mxu0 %v1097
        %1111 = vmatpush.bf16.msra.mxu0 %v1096
        %1112 = vmatpush.bf16.msra.mxu0 %v1095
        %1113 = vmatpush.bf16.msra.mxu0 %v1094
        %1114 = vmatpush.bf16.msra.mxu0 %v1093
        %1115 = vmatpush.bf16.msra.mxu0 %v1092
        %1116 = vmatmul.bf16.gmra.mxu0 %v1058
        %v1117 = vpop.f32.mrf.mxu0
        %v1118 = vadd.f32 0.0, %v1117
        %v1119 = vpop.f32.mrf.mxu0
        %v1120 = vadd.f32 0.0, %v1119
        %1121 = vdwg.mxu0
        %v1139 = vunpack.c.l.b16 %v1005
        %v1140 = vunpack.c.l.b16 %v1006
        %v1141 = vunpack.c.l.b16 %v1007
        %v1142 = vunpack.c.l.b16 %v1008
        %v1143 = vunpack.c.l.b16 %v1009
        %v1144 = vunpack.c.l.b16 %v1010
        %v1145 = vunpack.c.l.b16 %v1011
        %v1146 = vunpack.c.l.b16 %v1012
        %v1147 = vunpack.c.l.b16 %v1013
        %v1148 = vunpack.c.l.b16 %v1014
        %v1149 = vunpack.c.l.b16 %v1015
        %v1150 = vunpack.c.l.b16 %v1016
        %v1151 = vunpack.c.l.b16 %v1017
        %v1152 = vunpack.c.l.b16 %v1018
        %v1153 = vunpack.c.l.b16 %v1019
        %v1154 = vunpack.c.l.b16 %v1020
        %v1155 = vpack.c.b16 %v1140, %v1139
        %v1156 = vpack.c.b16 %v1142, %v1141
        %v1157 = vpack.c.b16 %v1144, %v1143
        %v1158 = vpack.c.b16 %v1146, %v1145
        %v1159 = vpack.c.b16 %v1148, %v1147
        %v1160 = vpack.c.b16 %v1150, %v1149
        %v1161 = vpack.c.b16 %v1152, %v1151
        %v1162 = vpack.c.b16 %v1154, %v1153
        %1171 = vmatpush.bf16.msra.mxu0 %v1162
        %1172 = vmatpush.bf16.msra.mxu0 %v1161
        %1173 = vmatpush.bf16.msra.mxu0 %v1160
        %1174 = vmatpush.bf16.msra.mxu0 %v1159
        %1175 = vmatpush.bf16.msra.mxu0 %v1158
        %1176 = vmatpush.bf16.msra.mxu0 %v1157
        %1177 = vmatpush.bf16.msra.mxu0 %v1156
        %1178 = vmatpush.bf16.msra.mxu0 %v1155
        %1179 = vmatmul.bf16.gmra.mxu0 %v1045
        %v1180 = vpop.f32.mrf.mxu0
        %v1181 = vadd.f32 %v1118, %v1180
        %v1182 = vpop.f32.mrf.mxu0
        %v1183 = vadd.f32 %v1120, %v1182
        %1184 = vdwg.mxu0
        %v1185 = vld [vmem:[#allocation3] sm:$0xe]
        %s1186 = scalar_lea.vmem [#allocation10], 128
        %v1187 = vld [vmem:[%s1186] sm:$0xf]
        %v1188 = vld [vmem:[%s1186 + $0x4] sm:$0xf]
        %v1189 = vld [vmem:[%s1186 + $0x8] sm:$0xf]
        %v1190 = vld [vmem:[%s1186 + $0xc] sm:$0xf]
        %v1191 = vld [vmem:[%s1186 + $0x10] sm:$0xf]
        %v1192 = vld [vmem:[%s1186 + $0x14] sm:$0xf]
        %v1193 = vld [vmem:[%s1186 + $0x18] sm:$0xf]
        %v1194 = vld [vmem:[%s1186 + $0x1c] sm:$0xf]
        %v1195 = vld [vmem:[%s1186 + $0x20] sm:$0xf]
        %v1196 = vld [vmem:[%s1186 + $0x24] sm:$0xf]
        %v1197 = vld [vmem:[%s1186 + $0x28] sm:$0xf]
        %v1198 = vld [vmem:[%s1186 + $0x2c] sm:$0xf]
        %v1199 = vld [vmem:[%s1186 + $0x30] sm:$0xf]
        %v1200 = vld [vmem:[%s1186 + $0x34] sm:$0xf]
        %v1201 = vld [vmem:[%s1186 + $0x38] sm:$0xf]
        %v1202 = vld [vmem:[%s1186 + $0x3c] sm:$0xf]
        %v1204 = vunpack.c.l.b16 %v1185
        %v1205 = vpack.c.b16 %v1043, %v1204
        %v1206 = vrot.slane %v1205, 1
        %v1207 = vrot.slane %v1046, 1
        %v1208 = vsel %vm831, %v1206, %v1207
        %v1226 = vunpack.c.l.b16 %v1187
        %v1227 = vunpack.c.l.b16 %v1188
        %v1228 = vunpack.c.l.b16 %v1189
        %v1229 = vunpack.c.l.b16 %v1190
        %v1230 = vunpack.c.l.b16 %v1191
        %v1231 = vunpack.c.l.b16 %v1192
        %v1232 = vunpack.c.l.b16 %v1193
        %v1233 = vunpack.c.l.b16 %v1194
        %v1234 = vunpack.c.l.b16 %v1195
        %v1235 = vunpack.c.l.b16 %v1196
        %v1236 = vunpack.c.l.b16 %v1197
        %v1237 = vunpack.c.l.b16 %v1198
        %v1238 = vunpack.c.l.b16 %v1199
        %v1239 = vunpack.c.l.b16 %v1200
        %v1240 = vunpack.c.l.b16 %v1201
        %v1241 = vunpack.c.l.b16 %v1202
        %v1242 = vpack.c.b16 %v1227, %v1226
        %v1243 = vpack.c.b16 %v1229, %v1228
        %v1244 = vpack.c.b16 %v1231, %v1230
        %v1245 = vpack.c.b16 %v1233, %v1232
        %v1246 = vpack.c.b16 %v1235, %v1234
        %v1247 = vpack.c.b16 %v1237, %v1236
        %v1248 = vpack.c.b16 %v1239, %v1238
        %v1249 = vpack.c.b16 %v1241, %v1240
        %1258 = vmatpush.bf16.msra.mxu0 %v1249
        %1259 = vmatpush.bf16.msra.mxu0 %v1248
        %1260 = vmatpush.bf16.msra.mxu0 %v1247
        %1261 = vmatpush.bf16.msra.mxu0 %v1246
        %1262 = vmatpush.bf16.msra.mxu0 %v1245
        %1263 = vmatpush.bf16.msra.mxu0 %v1244
        %1264 = vmatpush.bf16.msra.mxu0 %v1243
        %1265 = vmatpush.bf16.msra.mxu0 %v1242
        %1266 = vmatmul.bf16.gmra.mxu0 %v1208
        %v1267 = vpop.f32.mrf.mxu0
        %v1268 = vadd.f32 0.0, %v1267
        %v1269 = vpop.f32.mrf.mxu0
        %v1270 = vadd.f32 0.0, %v1269
        %1271 = vdwg.mxu0
        %v1272 = vadd.f32 %v1181, %v1268
        %v1273 = vadd.f32 %v1183, %v1270
        %v1274 = vld [vmem:[%s5] sm:$0x1]
        %v1276 = vperm.slane %v1274, 0
        %v1278 = vadd.f32 %v1272, %v1276
        %v1279 = vadd.f32 %v1273, %v1276
        %v1280 = vmax.f32 %v1278, 0.0
        %v1281 = vmax.f32 %v1279, 0.0
        %1282 = vst [vmem:[%s346] sm:$0xff] %v1280
        %1283 = vst [vmem:[%s346 + $0x8] sm:$0xff] %v1281
        %s1284 = sand.u32 %s171, 1
        %s1285 = scalar_lea.sflag [#allocation6], %s1284
        %s1286 = sand.u32 %s171, 1
        %s1287 = smul.addr %s1286, 16
        %s1288 = scalar_lea.vmem [#allocation12], %s1287
        // Predicated region
        $region61: #{tpu_custom_call.1} parent=43 // pred_check
          %p1289 = pneg %p181
        $region62: #{tpu_custom_call.1} parent=43 // pred_check_branch
          %1291 = sbr.rel (%p1289) target = $region64
        $region63: #{tpu_custom_call.1} parent=43 // pred_region
          %1293 = vsyncadd %s1285, 0
          %s1294 = smul.addr %s27, 2
          %s1295 = smul.addr %s1294, 8
          %s1296 = scalar_lea.hbm %s6, %s1295
          %s1297 = sshll.u32 %s1288, 4
          %s1298 = int_to_ptr.vmem [resolvable:$true] %s1297
          %s1299 = sshll.u32 %s1296, 4
          %s1300 = int_to_ptr.hbm [resolvable:$true] %s1299
          %1305 = dma.vmem_to_hbm [thread:$0]  %s1298, 256, %s1300, %s1285, 128, 128, 8
        $region64: #{tpu_custom_call.1} parent=43 // pred_fallthru
          _
      $region44: #{tpu_custom_call.1} parent=5 // pred_fallthru
        _
      %p1306 = scmp.le.s32.totalorder 2, %s22
      // Predicated region
      $region65: #{tpu_custom_call.1} parent=5 // pred_check
        %p1307 = pneg %p1306
      $region66: #{tpu_custom_call.1} parent=5 // pred_check_branch
        %1309 = sbr.rel (%p1307) target = $region68
      $region67: #{tpu_custom_call.1} parent=5 // pred_region
        %s1310 = ssub.s32 %s22, 2
        // Predicated region
        $region69: #{tpu_custom_call.1} parent=67 // pred_check
          %p1311 = pneg %p187
        $region70: #{tpu_custom_call.1} parent=67 // pred_check_branch
          %1313 = sbr.rel (%p1311) target = $region72
        $region71: #{tpu_custom_call.1} parent=67 // pred_region
          %s1314 = sand.u32 %s172, 1
          %s1315 = scalar_lea.sflag [#allocation6], %s1314
          %s1316 = sand.u32 %s172, 1
          %s1317 = smul.addr %s1316, 16
          %s1318 = scalar_lea.vmem [#allocation12], %s1317
          %1320 = dma.done %s1315, 256
        $region72: #{tpu_custom_call.1} parent=67 // pred_fallthru
          _
      $region68: #{tpu_custom_call.1} parent=5 // pred_fallthru
        _
    $region6: #{tpu_custom_call.1} parent=1 // loop_footer
      %s26 = sadd.s32 1, %s22
    $region7: #{tpu_custom_call.1} parent=1 // loop_footer_branch
      %21 = sbr.rel target = $region3
    $region8: #{tpu_custom_call.1} parent=1 // loop_exit
      _
    %1321 = vsyncpa [#allocation5], 1
    %s1322 = scalar_lea.sflag [#allocation5], 1
    %1323 = vsyncpa %s1322, 1
    %1324 = vsyncpa [#allocation8], 1
    %s1325 = scalar_lea.sflag [#allocation8], 1
    %1326 = vsyncpa %s1325, 1
    %1327 = vsyncpa [#allocation11], 1
    %1328 = vsyncpa [#allocation6], 1
    %s1329 = scalar_lea.sflag [#allocation6], 1
    %1330 = vsyncpa %s1329, 1

</llo_original>
